<compile_context>
chip_gen: v7x
topology: tpu7x:2x2x1
jax: 0.10.0
libtpu: 0.0.40
codegen_flags: <defaults>
</compile_context>

<pallas_src>
import jax
import jax.numpy as jnp
from jax import lax
from jax.experimental import pallas as pl
from jax.experimental.pallas import tpu as pltpu

TAU = 1.0  # tau == 1 in the module; if != 1, fold as a multiply by 1/tau.


def diffpool_kernel(x_ref, w_ref, b_ref, g_ref, assign_ref, pooled_ref):
    t = pl.program_id(1)

    # Per-graph pooled accumulator is the resident output block: zero it on the
    # first node tile of each graph, accumulate on every tile.
    @pl.when(t == 0)
    def _init():
        pooled_ref[...] = jnp.zeros_like(pooled_ref)

    x = x_ref[...]                                            # [tn, D] f32 (exact, for pooling)

    # Linear layer on the MXU in bf16 (logits only feed an argmax), f32 accumulate;
    # bias and gumbel noise added in f32.
    logits = jnp.dot(x.astype(jnp.bfloat16), w_ref[...],
                     preferred_element_type=jnp.float32) + b_ref[...]
    y = logits + g_ref[...]                                   # [tn, K] f32   (tau == 1)

    tn, K = y.shape

    # Hard gumbel-softmax forward value == one-hot of (first) argmax along last axis.
    col = lax.broadcasted_iota(jnp.int32, (tn, K), 1)
    row_max = jnp.max(y, axis=-1, keepdims=True)
    idx = jnp.min(jnp.where(y == row_max, col, K), axis=-1, keepdims=True)  # [tn, 1]
    # Guard: a NaN row would make every compare false (idx == K); clamp so it stays a
    # valid cluster of this graph instead of silently vanishing / crossing graphs.
    idx = jnp.minimum(idx, K - 1)
    onehot = (col == idx).astype(jnp.float32)                 # [tn, K]
    assign_ref[...] = onehot

    # Per-graph pooling: pooled[k, :] += sum_n onehot[n, k] * x[n, :]  (onehot^T @ x).
    # Contraction is over the node dim of both small per-tile operands -> MXU.
    pooled_ref[...] += lax.dot_general(
        onehot, x, (((0,), (0,)), ((), ())),
        preferred_element_type=jnp.float32)


def _largest_tile(n, cap=512):
    """Largest multiple-of-8 divisor of n that is <= cap (n itself if n <= cap)."""
    if n <= cap:
        return n
    best = 8
    t = 8
    while t <= cap:
        if n % t == 0:
            best = t
        t += 8
    return best


def diffpool_forward(x, w_t, bias, gumbel, *, batch_size, output_node,
                     nodes_per_graph, tile_n=None):
    """x:[N,D] f32, w_t:[D,K] (cast to bf16), bias:[1,K] f32, gumbel:[N,K] f32.

    Assumes a PackedGraph layout with `nodes_per_graph` contiguous nodes per graph.
    Returns (assignment one-hot [N,K] f32, pooled features [B*K, D] f32).
    """
    N, D = x.shape
    K = output_node
    B = batch_size
    Ng = nodes_per_graph
    assert N == B * Ng, "x rows must be batch_size * nodes_per_graph"
    assert Ng % 8 == 0, "nodes_per_graph must be a multiple of 8 (sublane tiling)"
    # TODO(synk): ragged per-graph node counts need PrefetchScalarGridSpec with
    # per-graph node offsets; the demo uses uniform graph sizes.

    if tile_n is None:
        tile_n = _largest_tile(Ng)
    assert Ng % tile_n == 0 and tile_n % 8 == 0
    T = Ng // tile_n

    w_t = jnp.asarray(w_t, dtype=jnp.bfloat16)

    def node_map(b, t):
        return (b * T + t, 0)

    assign, pooled = pl.pallas_call(
        diffpool_kernel,
        out_shape=(jax.ShapeDtypeStruct((N, K), jnp.float32),
                   jax.ShapeDtypeStruct((B * K, D), jnp.float32)),
        grid_spec=pltpu.PrefetchScalarGridSpec(
            num_scalar_prefetch=0,
            grid=(B, T),
            in_specs=[
                pl.BlockSpec((tile_n, D), node_map),          # x tile of graph b
                pl.BlockSpec((D, K), lambda b, t: (0, 0)),    # W^T (bf16)
                pl.BlockSpec((1, K), lambda b, t: (0, 0)),    # bias
                pl.BlockSpec((tile_n, K), node_map),          # gumbel noise tile
            ],
            out_specs=[
                pl.BlockSpec((tile_n, K), node_map),          # assignment one-hot
                pl.BlockSpec((K, D), lambda b, t: (b, 0)),    # pooled rows of graph b
            ],
        ),
        compiler_params=pltpu.CompilerParams(
            dimension_semantics=("parallel", "arbitrary"),
            vmem_limit_bytes=48 * 1024 * 1024,
        ),
    )(x, w_t, bias, gumbel)
    return assign, pooled


def reference_forward(x, w_t, bias, gumbel, batch_size, output_node, nodes_per_graph):
    """Plain-JAX reference using the same bf16-logits / f32-everything-else math."""
    w_t = jnp.asarray(w_t, dtype=jnp.bfloat16)
    logits = jnp.dot(x.astype(jnp.bfloat16), w_t,
                     preferred_element_type=jnp.float32) + bias
    y = logits + gumbel
    idx = jnp.argmax(y, axis=-1)
    onehot = jax.nn.one_hot(idx, output_node, dtype=jnp.float32)
    node2graph = jnp.repeat(jnp.arange(batch_size, dtype=jnp.int32), nodes_per_graph)
    pooled_idx = node2graph * output_node + idx
    pooled = jnp.zeros((batch_size * output_node, x.shape[1]), jnp.float32)
    pooled = pooled.at[pooled_idx].add(x)
    return onehot, pooled


if __name__ == "__main__":
    # Small synthetic problem: 2 graphs, 32 nodes each, 16 input features, 8 clusters.
    B = 2
    NODES_PER_GRAPH = 32
    N = B * NODES_PER_GRAPH
    D = 16            # input_dim (== output_dim, default)
    K = 8             # output_node
    E = 40            # number of edges

    key = jax.random.PRNGKey(0)
    kx, kw, kb, kg, ke = jax.random.split(key, 5)

    x = jax.random.normal(kx, (N, D), dtype=jnp.float32)

    # Deterministic nn.Linear(D, K) init: U(-1/sqrt(D), 1/sqrt(D)); pass weight transposed.
    bound = 1.0 / (D ** 0.5)
    w = jax.random.uniform(kw, (K, D), minval=-bound, maxval=bound, dtype=jnp.float32)
    bias = jax.random.uniform(kb, (1, K), minval=-bound, maxval=bound, dtype=jnp.float32)
    w_t = jnp.asarray(w.T, dtype=jnp.bfloat16)   # [D, K] bf16 (MXU operand)

    # Gumbel noise (same distribution as torch's -log(Exp(1)) sampling).
    gumbel = jax.random.gumbel(kg, (N, K), dtype=jnp.float32)
    edge_list = jax.random.randint(ke, (E, 2), 0, N, dtype=jnp.int32)

    # tile_n=16 -> two node tiles per graph, exercising the resident-accumulator path.
    assignment, pooled = diffpool_forward(
        x, w_t, bias, gumbel, batch_size=B, output_node=K,
        nodes_per_graph=NODES_PER_GRAPH, tile_n=16)
    assignment = jax.block_until_ready(assignment)
    pooled = jax.block_until_ready(pooled)

    # Graph-construction glue (outside the kernel): remap edge endpoints to clusters.
    cluster = jnp.argmax(assignment, axis=-1).astype(jnp.int32)
    new_edge_list = cluster[edge_list]                 # [E, 2] pooled-graph edges
    new_edge_list = jax.block_until_ready(new_edge_list)
    # TODO(synk): PackedGraph/Graph object re-wrapping (num_nodes/num_edges bookkeeping)
    # has no Pallas equivalent; edge_weight passes through unchanged.

    # Sanity check against a plain-JAX reference of the same math.
    ref_assign, ref_pooled = reference_forward(x, w_t, bias, gumbel, B, K, NODES_PER_GRAPH)
    assert jnp.array_equal(assignment, ref_assign), "assignment mismatch"
    assert jnp.allclose(pooled, ref_pooled, atol=1e-5), "pooled output mismatch"

    print("KERNEL_OK")
</pallas_src>

<mosaic_0001>
module attributes {stable_mosaic.version = 11 : i64} {
  func.func @diffpool_kernel(%arg0: i32, %arg1: i32, %arg2: memref<16x16xf32, #tpu.memory_space<vmem>>, %arg3: memref<16x8xbf16, #tpu.memory_space<vmem>>, %arg4: memref<1x8xf32, #tpu.memory_space<vmem>>, %arg5: memref<16x8xf32, #tpu.memory_space<vmem>>, %arg6: memref<16x8xf32, #tpu.memory_space<vmem>>, %arg7: memref<8x16xf32, #tpu.memory_space<vmem>>) attributes {dimension_semantics = [#tpu.dimension_semantics<parallel>, #tpu.dimension_semantics<arbitrary>], iteration_bounds = array<i64: 2, 2>, scalar_prefetch = 0 : i64, scratch_operands = 0 : i64, tpu.core_type = #tpu.core_type<tc>, window_params = [{transform_indices = @transform_0, window_bounds = array<i64: 16, 16>}, {pipeline_mode = #tpu.pipeline_mode<synchronous>, transform_indices = @transform_1, window_bounds = array<i64: 16, 8>}, {pipeline_mode = #tpu.pipeline_mode<synchronous>, transform_indices = @transform_2, window_bounds = array<i64: 1, 8>}, {transform_indices = @transform_3, window_bounds = array<i64: 16, 8>}, {transform_indices = @transform_4, window_bounds = array<i64: 16, 8>}, {transform_indices = @transform_5, window_bounds = array<i64: 8, 16>}]} {
    %c0_i32 = arith.constant 0 : i32
    %0 = arith.cmpi eq, %arg1, %c0_i32 : i32
    %1 = arith.extui %0 : i1 to i32
    %c0_i32_0 = arith.constant 0 : i32
    %2 = arith.cmpi ne, %1, %c0_i32_0 : i32
    scf.if %2 {
      %cst_17 = arith.constant 0.000000e+00 : f32
      %32 = vector.broadcast %cst_17 : f32 to vector<8x16xf32>
      %c0_18 = arith.constant 0 : index
      %c0_19 = arith.constant 0 : index
      %33 = vector.load %arg7[%c0_18, %c0_19] : memref<8x16xf32, #tpu.memory_space<vmem>>, vector<8x16xf32>
      tpu.vector_store %arg7[%c0_18, %c0_19], %32 {strides = array<i32>} : memref<8x16xf32, #tpu.memory_space<vmem>>, vector<8x16xf32>,
    } else {
    }
    %c0 = arith.constant 0 : index
    %c0_1 = arith.constant 0 : index
    %3 = vector.load %arg2[%c0, %c0_1] : memref<16x16xf32, #tpu.memory_space<vmem>>, vector<16x16xf32>
    %4 = arith.truncf %3 : vector<16x16xf32> to vector<16x16xbf16>
    %c0_2 = arith.constant 0 : index
    %c0_3 = arith.constant 0 : index
    %5 = vector.load %arg3[%c0_2, %c0_3] : memref<16x8xbf16, #tpu.memory_space<vmem>>, vector<16x8xbf16>
    %cst = arith.constant dense<0.000000e+00> : vector<16x8xf32>
    %6 = tpu.matmul %4, %5, %cst {dimension_numbers = #tpu.dot_dimension_numbers<[1], [0], [0], [1], [0, 0, 1, 1], [], []>} : vector<16x16xbf16>, vector<16x8xbf16>, vector<16x8xf32> -> vector<16x8xf32>
    %c0_4 = arith.constant 0 : index
    %c0_5 = arith.constant 0 : index
    %7 = vector.load %arg4[%c0_4, %c0_5] : memref<1x8xf32, #tpu.memory_space<vmem>>, vector<1x8xf32>
    %8 = vector.broadcast %7 : vector<1x8xf32> to vector<16x8xf32>
    %9 = arith.addf %6, %8 : vector<16x8xf32>
    %c0_6 = arith.constant 0 : index
    %c0_7 = arith.constant 0 : index
    %10 = vector.load %arg5[%c0_6, %c0_7] : memref<16x8xf32, #tpu.memory_space<vmem>>, vector<16x8xf32>
    %11 = arith.addf %9, %10 : vector<16x8xf32>
    %12 = tpu.iota {dimensions = array<i32: 1>} : vector<16x8xi32>
    %cst_8 = arith.constant dense<0xFF800000> : vector<16xf32>
    %13 = vector.multi_reduction <maximumf>, %11, %cst_8 [1] : vector<16x8xf32> to vector<16xf32>
    %14 = vector.shape_cast %13 : vector<16xf32> to vector<16x1xf32>
    %15 = vector.broadcast %14 : vector<16x1xf32> to vector<16x8xf32>
    %16 = arith.cmpf oeq, %11, %15 : vector<16x8xf32>
    %c8_i32 = arith.constant 8 : i32
    %17 = vector.broadcast %c8_i32 : i32 to vector<16x8xi32>
    %18 = arith.select %16, %12, %17 : vector<16x8xi1>, vector<16x8xi32>
    %cst_9 = arith.constant dense<2147483647> : vector<16xi32>
    %19 = vector.multi_reduction <minsi>, %18, %cst_9 [1] : vector<16x8xi32> to vector<16xi32>
    %20 = vector.shape_cast %19 : vector<16xi32> to vector<16x1xi32>
    %c7_i32 = arith.constant 7 : i32
    %21 = vector.broadcast %c7_i32 : i32 to vector<16x1xi32>
    %22 = arith.minsi %20, %21 : vector<16x1xi32>
    %23 = vector.broadcast %22 : vector<16x1xi32> to vector<16x8xi32>
    %24 = arith.cmpi eq, %12, %23 : vector<16x8xi32>
    %25 = arith.extui %24 : vector<16x8xi1> to vector<16x8xi32>
    %26 = arith.sitofp %25 : vector<16x8xi32> to vector<16x8xf32>
    %c0_10 = arith.constant 0 : index
    %c0_11 = arith.constant 0 : index
    %27 = vector.load %arg6[%c0_10, %c0_11] : memref<16x8xf32, #tpu.memory_space<vmem>>, vector<16x8xf32>
    tpu.vector_store %arg6[%c0_10, %c0_11], %26 {strides = array<i32>} : memref<16x8xf32, #tpu.memory_space<vmem>>, vector<16x8xf32>,
    %c0_12 = arith.constant 0 : index
    %c0_13 = arith.constant 0 : index
    %28 = vector.load %arg7[%c0_12, %c0_13] : memref<8x16xf32, #tpu.memory_space<vmem>>, vector<8x16xf32>
    %cst_14 = arith.constant dense<0.000000e+00> : vector<8x16xf32>
    %29 = tpu.matmul %26, %3, %cst_14 {dimension_numbers = #tpu.dot_dimension_numbers<[0], [0], [1], [1], [0, 1, 1, 1], [], []>} : vector<16x8xf32>, vector<16x16xf32>, vector<8x16xf32> -> vector<8x16xf32>
    %30 = arith.addf %28, %29 : vector<8x16xf32>
    %c0_15 = arith.constant 0 : index
    %c0_16 = arith.constant 0 : index
    %31 = vector.load %arg7[%c0_15, %c0_16] : memref<8x16xf32, #tpu.memory_space<vmem>>, vector<8x16xf32>
    tpu.vector_store %arg7[%c0_15, %c0_16], %30 {strides = array<i32>} : memref<8x16xf32, #tpu.memory_space<vmem>>, vector<8x16xf32>,
    return
  }
  func.func @transform_0(%arg0: i32, %arg1: i32) -> (i32, i32) {
    %c2_i32 = arith.constant 2 : i32
    %0 = arith.muli %arg0, %c2_i32 : i32
    %1 = arith.addi %0, %arg1 : i32
    %c0_i32 = arith.constant 0 : i32
    %c0_i32_0 = arith.constant 0 : i32
    return %1, %c0_i32 : i32, i32
  }
  func.func @transform_1(%arg0: i32, %arg1: i32) -> (i32, i32) {
    %c0_i32 = arith.constant 0 : i32
    %c0_i32_0 = arith.constant 0 : i32
    %c0_i32_1 = arith.constant 0 : i32
    return %c0_i32, %c0_i32_0 : i32, i32
  }
  func.func @transform_2(%arg0: i32, %arg1: i32) -> (i32, i32) {
    %c0_i32 = arith.constant 0 : i32
    %c0_i32_0 = arith.constant 0 : i32
    %c0_i32_1 = arith.constant 0 : i32
    return %c0_i32, %c0_i32_0 : i32, i32
  }
  func.func @transform_3(%arg0: i32, %arg1: i32) -> (i32, i32) {
    %c2_i32 = arith.constant 2 : i32
    %0 = arith.muli %arg0, %c2_i32 : i32
    %1 = arith.addi %0, %arg1 : i32
    %c0_i32 = arith.constant 0 : i32
    %c0_i32_0 = arith.constant 0 : i32
    return %1, %c0_i32 : i32, i32
  }
  func.func @transform_4(%arg0: i32, %arg1: i32) -> (i32, i32) {
    %c2_i32 = arith.constant 2 : i32
    %0 = arith.muli %arg0, %c2_i32 : i32
    %1 = arith.addi %0, %arg1 : i32
    %c0_i32 = arith.constant 0 : i32
    %c0_i32_0 = arith.constant 0 : i32
    return %1, %c0_i32 : i32, i32
  }
  func.func @transform_5(%arg0: i32, %arg1: i32) -> (i32, i32) {
    %c0_i32 = arith.constant 0 : i32
    %c0_i32_0 = arith.constant 0 : i32
    return %arg0, %c0_i32 : i32, i32
  }
}

</mosaic_0001>

<llo_original>
// kernel: tpu_custom_call.1
$region0: #{tpu_custom_call.1}
  #allocation0 [shape = 'u32[]', space=smem, size = 0x4, offset = 0x4, fixed_abs, tag = 'smem constant byte address 0x4 - core index']
  #allocation1 [shape = 'u32[144,128]{1,0:T(1,128)}', space=vmem, size = 0x12000, scoped, tag = 'internal scratch']
  %s0 = inlined_call_operand.vmem [shape: f32[64,16], index: 0, kind: input, shape index: {}]
  %s1 = inlined_call_operand.vmem [shape: bf16[16,8], index: 1, kind: input, shape index: {}]
  %s2 = inlined_call_operand.vmem [shape: f32[1,8], index: 2, kind: input, shape index: {}]
  %s3 = inlined_call_operand.vmem [shape: f32[64,8], index: 3, kind: input, shape index: {}]
  %s4 = inlined_call_operand.vmem [shape: f32[64,8], index: 4, kind: output, shape index: {0}]
  %s5 = inlined_call_operand.hbm [shape: f32[16,16], index: 5, kind: output, shape index: {1}]
  %6 = xla_tuple %s4, %s5
  %s7 = sld [smem:[#allocation0]]
  $region61: #{tpu_custom_call.1} parent=0
    _
  %s9 = ssub.s32 1, %s7
  %s10 = scalar_select 0, %s9, %s7
  $region1: #{tpu_custom_call.1} parent=0
    #allocation2 [shape = 'u8[8192]{0}', space=vmem, size = 0x2000, scoped, tag = 'output window, operand 1']
    #allocation3 [shape = 's32[2]{0}', space=sflag, size = 0x8, scoped, tag = 'scoped memory for tpu_custom_call.1']
    %11 = vsyncpa [#allocation3], 0
    %s12 = scalar_lea.sflag [#allocation3], 1
    %13 = vsyncpa %s12, 0
    loop: start=0, step=1, limit=6
    $region2: #{tpu_custom_call.1} parent=1 // loop_pre_header
      _
    $region3: #{tpu_custom_call.1} parent=1 // loop_header
      %s15 = sphi 0, %s19
      %p16 = scmp.ge.s32.totalorder %s15, 6
      %s22 = sphi 0, %s34
      %s23 = sphi 0, %s30
      %s24 = sphi 0, %s22
      %s25 = sphi 0, %s23
      %s26 = sphi 0, %s24
      %s27 = sphi 0, %s25
      %s41 = sphi 0, %s43
      %s44 = sphi 0, %s41
      %s45 = sphi 0, %s44
      %s61 = sphi 0, %s45
      %s65 = sphi 0, %s65
      %s67 = sphi 0, %s65
      %s68 = sphi 0, %s67
      %s82 = sphi 0, %s68
      %s86 = sphi 0, %s86
      %s88 = sphi 0, %s86
      %s89 = sphi 0, %s88
      %s103 = sphi 0, %s89
      %s113 = sphi 0, %s115
      %s116 = sphi 0, %s113
      %s117 = sphi 0, %s116
      %s133 = sphi 0, %s117
      %s143 = sphi 0, %s145
      %s146 = sphi 0, %s143
      %s147 = sphi 0, %s146
      %s163 = sphi 0, %s147
      %s169 = sphi 0, %s171
      %s172 = sphi 0, %s169
      %s173 = sphi 0, %s172
      %s189 = sphi 0, %s173
    $region4: #{tpu_custom_call.1} parent=1 // loop_header_branch
      %18 = sbr.rel (%p16) target = $region8
    $region5: #{tpu_custom_call.1} parent=1 // loop_body
      %s20 = ssub.s32 %s15, 1
      %s21 = ssub.s32 %s15, 2
      %s28 = sadd.s32 1, %s23
      %p29 = scmp.ge.s32.totalorder %s28, 2
      %s30 = scalar_select %p29, 0, %s28
      %s31 = sadd.s32 1, %s22
      %s32 = scalar_select %p29, %s31, %s22
      %p33 = scmp.ge.s32.totalorder %s32, 2
      %s34 = scalar_select %p33, 0, %s32
      %s35 = smul.u32 %s22, 2
      %s36 = sadd.s32 %s35, %s23
      %s37 = smul.u32 %s34, 2
      %s38 = sadd.s32 %s37, %s30
      %s39 = ssub.s32 %s36, %s38
      %p40 = scmp.eq.s32.totalorder %s39, 0
      %s42 = sadd.s32 %s41, 1
      %s43 = scalar_select %p40, %s41, %s42
      %p46 = pneg %p40
      %p47 = scmp.eq.s32.totalorder %s15, 3
      %p48 = por %p46, %p47
      %p49 = scmp.ne.s32.totalorder %s41, %s44
      %p50 = scmp.eq.s32.totalorder %s15, 0
      %p51 = por %p49, %p50
      %p52 = scmp.ne.s32.totalorder %s41, %s44
      %p53 = scmp.eq.s32.totalorder %s20, 3
      %p54 = por %p52, %p53
      %p55 = scmp.ne.s32.totalorder %s44, %s45
      %p56 = scmp.eq.s32.totalorder %s20, 0
      %p57 = por %p55, %p56
      %p58 = scmp.ne.s32.totalorder %s44, %s45
      %p59 = scmp.eq.s32.totalorder %s21, 3
      %p60 = por %p58, %p59
      %p62 = scmp.ne.s32.totalorder %s45, %s61
      %p63 = scmp.eq.s32.totalorder %s21, 0
      %p64 = por %p62, %p63
      %s66 = sadd.s32 %s65, 1
      %p69 = scmp.eq.s32.totalorder %s15, 3
      %p70 = scmp.ne.s32.totalorder %s65, %s67
      %p71 = scmp.eq.s32.totalorder %s15, 0
      %p72 = por %p70, %p71
      %p73 = scmp.ne.s32.totalorder %s65, %s67
      %p74 = scmp.eq.s32.totalorder %s20, 3
      %p75 = por %p73, %p74
      %p76 = scmp.ne.s32.totalorder %s67, %s68
      %p77 = scmp.eq.s32.totalorder %s20, 0
      %p78 = por %p76, %p77
      %p79 = scmp.ne.s32.totalorder %s67, %s68
      %p80 = scmp.eq.s32.totalorder %s21, 3
      %p81 = por %p79, %p80
      %p83 = scmp.ne.s32.totalorder %s68, %s82
      %p84 = scmp.eq.s32.totalorder %s21, 0
      %p85 = por %p83, %p84
      %s87 = sadd.s32 %s86, 1
      %p90 = scmp.eq.s32.totalorder %s15, 3
      %p91 = scmp.ne.s32.totalorder %s86, %s88
      %p92 = scmp.eq.s32.totalorder %s15, 0
      %p93 = por %p91, %p92
      %p94 = scmp.ne.s32.totalorder %s86, %s88
      %p95 = scmp.eq.s32.totalorder %s20, 3
      %p96 = por %p94, %p95
      %p97 = scmp.ne.s32.totalorder %s88, %s89
      %p98 = scmp.eq.s32.totalorder %s20, 0
      %p99 = por %p97, %p98
      %p100 = scmp.ne.s32.totalorder %s88, %s89
      %p101 = scmp.eq.s32.totalorder %s21, 3
      %p102 = por %p100, %p101
      %p104 = scmp.ne.s32.totalorder %s89, %s103
      %p105 = scmp.eq.s32.totalorder %s21, 0
      %p106 = por %p104, %p105
      %s107 = smul.u32 %s22, 2
      %s108 = sadd.s32 %s107, %s23
      %s109 = smul.u32 %s34, 2
      %s110 = sadd.s32 %s109, %s30
      %s111 = ssub.s32 %s108, %s110
      %p112 = scmp.eq.s32.totalorder %s111, 0
      %s114 = sadd.s32 %s113, 1
      %s115 = scalar_select %p112, %s113, %s114
      %p118 = pneg %p112
      %p119 = scmp.eq.s32.totalorder %s15, 3
      %p120 = por %p118, %p119
      %p121 = scmp.ne.s32.totalorder %s113, %s116
      %p122 = scmp.eq.s32.totalorder %s15, 0
      %p123 = por %p121, %p122
      %p124 = scmp.ne.s32.totalorder %s113, %s116
      %p125 = scmp.eq.s32.totalorder %s20, 3
      %p126 = por %p124, %p125
      %p127 = scmp.ne.s32.totalorder %s116, %s117
      %p128 = scmp.eq.s32.totalorder %s20, 0
      %p129 = por %p127, %p128
      %p130 = scmp.ne.s32.totalorder %s116, %s117
      %p131 = scmp.eq.s32.totalorder %s21, 3
      %p132 = por %p130, %p131
      %p134 = scmp.ne.s32.totalorder %s117, %s133
      %p135 = scmp.eq.s32.totalorder %s21, 0
      %p136 = por %p134, %p135
      %s137 = smul.u32 %s22, 2
      %s138 = sadd.s32 %s137, %s23
      %s139 = smul.u32 %s34, 2
      %s140 = sadd.s32 %s139, %s30
      %s141 = ssub.s32 %s138, %s140
      %p142 = scmp.eq.s32.totalorder %s141, 0
      %s144 = sadd.s32 %s143, 1
      %s145 = scalar_select %p142, %s143, %s144
      %p148 = pneg %p142
      %p149 = scmp.eq.s32.totalorder %s15, 3
      %p150 = por %p148, %p149
      %p151 = scmp.ne.s32.totalorder %s143, %s146
      %p152 = scmp.eq.s32.totalorder %s15, 0
      %p153 = por %p151, %p152
      %p154 = scmp.ne.s32.totalorder %s143, %s146
      %p155 = scmp.eq.s32.totalorder %s20, 3
      %p156 = por %p154, %p155
      %p157 = scmp.ne.s32.totalorder %s146, %s147
      %p158 = scmp.eq.s32.totalorder %s20, 0
      %p159 = por %p157, %p158
      %p160 = scmp.ne.s32.totalorder %s146, %s147
      %p161 = scmp.eq.s32.totalorder %s21, 3
      %p162 = por %p160, %p161
      %p164 = scmp.ne.s32.totalorder %s147, %s163
      %p165 = scmp.eq.s32.totalorder %s21, 0
      %p166 = por %p164, %p165
      %s167 = ssub.s32 %s22, %s34
      %p168 = scmp.eq.s32.totalorder %s167, 0
      %s170 = sadd.s32 %s169, 1
      %s171 = scalar_select %p168, %s169, %s170
      %p174 = pneg %p168
      %p175 = scmp.eq.s32.totalorder %s15, 3
      %p176 = por %p174, %p175
      %p177 = scmp.ne.s32.totalorder %s169, %s172
      %p178 = scmp.eq.s32.totalorder %s15, 0
      %p179 = por %p177, %p178
      %p180 = scmp.ne.s32.totalorder %s169, %s172
      %p181 = scmp.eq.s32.totalorder %s20, 3
      %p182 = por %p180, %p181
      %p183 = scmp.ne.s32.totalorder %s172, %s173
      %p184 = scmp.eq.s32.totalorder %s20, 0
      %p185 = por %p183, %p184
      %p186 = scmp.ne.s32.totalorder %s172, %s173
      %p187 = scmp.eq.s32.totalorder %s21, 3
      %p188 = por %p186, %p187
      %p190 = scmp.ne.s32.totalorder %s173, %s189
      %p191 = scmp.eq.s32.totalorder %s21, 0
      %p192 = por %p190, %p191
      %p193 = scmp.le.s32.totalorder 1, %s15
      %p194 = scmp.lt.s32.totalorder %s15, 5
      %p195 = pnand %p193, %p194
      %p196 = pneg %p195
      // Predicated region
      $region9: #{tpu_custom_call.1} parent=5 // pred_check
        _
      $region10: #{tpu_custom_call.1} parent=5 // pred_check_branch
        %198 = sbr.rel (%p195) target = $region12
      $region11: #{tpu_custom_call.1} parent=5 // pred_region
        %s199 = ssub.s32 %s15, 1
        // Predicated region
        $region13: #{tpu_custom_call.1} parent=11 // pred_check
          %p200 = pneg %p78
        $region14: #{tpu_custom_call.1} parent=11 // pred_check_branch
          %202 = sbr.rel (%p200) target = $region16
        $region15: #{tpu_custom_call.1} parent=11 // pred_region
          _
        $region16: #{tpu_custom_call.1} parent=11 // pred_fallthru
          _
        // Predicated region
        $region17: #{tpu_custom_call.1} parent=11 // pred_check
          %p203 = pneg %p99
        $region18: #{tpu_custom_call.1} parent=11 // pred_check_branch
          %205 = sbr.rel (%p203) target = $region20
        $region19: #{tpu_custom_call.1} parent=11 // pred_region
          _
        $region20: #{tpu_custom_call.1} parent=11 // pred_fallthru
          _
      $region12: #{tpu_custom_call.1} parent=5 // pred_fallthru
        _
      %p206 = scmp.lt.s32.totalorder %s15, 4
      // Predicated region
      $region21: #{tpu_custom_call.1} parent=5 // pred_check
        %p207 = pneg %p206
      $region22: #{tpu_custom_call.1} parent=5 // pred_check_branch
        %209 = sbr.rel (%p207) target = $region24
      $region23: #{tpu_custom_call.1} parent=5 // pred_region
        // Predicated region
        $region25: #{tpu_custom_call.1} parent=23 // pred_check
          %p210 = pneg %p51
        $region26: #{tpu_custom_call.1} parent=23 // pred_check_branch
          %212 = sbr.rel (%p210) target = $region28
        $region27: #{tpu_custom_call.1} parent=23 // pred_region
          %s213 = smul.u32 %s22, 2
          %s214 = sadd.s32 %s213, %s23
          %s215 = smul.u32 2, %s214
          %p216 = scmp.lt.s32.totalorder %s215, 7
          %s217 = scalar_select %p216, %s215, 7
          %s218 = smul.addr %s217, 8
          %s219 = scalar_lea.vmem %s0, %s218
          %s220 = smul.u32 %s22, 2
          %s221 = sadd.s32 %s220, %s23
          %s222 = smul.u32 2, %s221
        $region28: #{tpu_custom_call.1} parent=23 // pred_fallthru
          _
        // Predicated region
        $region29: #{tpu_custom_call.1} parent=23 // pred_check
          %p223 = pneg %p123
        $region30: #{tpu_custom_call.1} parent=23 // pred_check_branch
          %225 = sbr.rel (%p223) target = $region32
        $region31: #{tpu_custom_call.1} parent=23 // pred_region
          %s226 = smul.u32 %s22, 2
          %s227 = sadd.s32 %s226, %s23
          %s228 = smul.u32 2, %s227
          %p229 = scmp.lt.s32.totalorder %s228, 7
          %s230 = scalar_select %p229, %s228, 7
          %s231 = smul.addr %s230, 8
          %s232 = scalar_lea.vmem %s3, %s231
          %s233 = smul.u32 %s22, 2
          %s234 = sadd.s32 %s233, %s23
          %s235 = smul.u32 2, %s234
        $region32: #{tpu_custom_call.1} parent=23 // pred_fallthru
          _
      $region24: #{tpu_custom_call.1} parent=5 // pred_fallthru
        _
      %p236 = scmp.le.s32.totalorder 1, %s15
      %p237 = scmp.lt.s32.totalorder %s15, 5
      %p238 = pnand %p236, %p237
      %p239 = pneg %p238
      // Predicated region
      $region33: #{tpu_custom_call.1} parent=5 // pred_check
        _
      $region34: #{tpu_custom_call.1} parent=5 // pred_check_branch
        %241 = sbr.rel (%p238) target = $region36
      $region35: #{tpu_custom_call.1} parent=5 // pred_region
        %s242 = ssub.s32 %s15, 1
        %s243 = smul.u32 %s24, 2
        %s244 = sadd.s32 %s243, %s25
        %s245 = smul.u32 2, %s244
        %p246 = scmp.lt.s32.totalorder %s245, 7
        %s247 = scalar_select %p246, %s245, 7
        %s248 = smul.addr %s247, 8
        %s249 = scalar_lea.vmem %s0, %s248
        %p250 = pneg %p57
        %p251 = pneg %p54
        %p252 = pneg %p78
        %p253 = pneg %p75
        %p254 = pneg %p99
        %p255 = pneg %p96
        %s256 = smul.u32 %s24, 2
        %s257 = sadd.s32 %s256, %s25
        %s258 = smul.u32 2, %s257
        %p259 = scmp.lt.s32.totalorder %s258, 7
        %s260 = scalar_select %p259, %s258, 7
        %s261 = smul.addr %s260, 8
        %s262 = scalar_lea.vmem %s3, %s261
        %p263 = pneg %p129
        %p264 = pneg %p126
        %p265 = pneg %p159
        %p266 = pneg %p156
        %s267 = smul.u32 %s24, 2
        %s268 = sadd.s32 %s267, %s25
        %s269 = smul.u32 2, %s268
        %p270 = scmp.lt.s32.totalorder %s269, 7
        %s271 = scalar_select %p270, %s269, 7
        %s272 = smul.addr %s271, 8
        %s273 = scalar_lea.vmem %s4, %s272
        %p274 = pneg %p185
        %p275 = pneg %p182
        %s276 = sand.u32 %s172, 1
        %s277 = scalar_lea.sflag [#allocation3], %s276
        %s278 = sand.u32 %s172, 1
        %s279 = smul.addr %s278, 8
        %s280 = scalar_lea.vmem [#allocation2], %s279
        %s281 = smul.u32 %s24, 2
        %s282 = sadd.s32 %s281, %s25
        %s283 = smul.u32 2, %s282
        %p284 = scmp.lt.s32.totalorder %s283, 7
        %s285 = scalar_select %p284, %s283, 7
        %s286 = smul.addr %s285, 8
        %s287 = scalar_lea.vmem %s0, %s286
        %s288 = smul.u32 %s24, 2
        %s289 = sadd.s32 %s288, %s25
        %s290 = smul.u32 2, %s289
        %s291 = smul.u32 %s24, 2
        %s292 = sadd.s32 %s291, %s25
        %s293 = smul.u32 2, %s292
        %p294 = scmp.lt.s32.totalorder %s293, 7
        %s295 = scalar_select %p294, %s293, 7
        %s296 = smul.addr %s295, 8
        %s297 = scalar_lea.vmem %s3, %s296
        %s298 = smul.u32 %s24, 2
        %s299 = sadd.s32 %s298, %s25
        %s300 = smul.u32 2, %s299
        %s301 = smul.u32 %s24, 2
        %s302 = sadd.s32 %s301, %s25
        %s303 = smul.u32 2, %s302
        %p304 = scmp.lt.s32.totalorder %s303, 7
        %s305 = scalar_select %p304, %s303, 7
        %s306 = smul.addr %s305, 8
        %s307 = scalar_lea.vmem %s4, %s306
        %s308 = smul.u32 %s24, 2
        %s309 = sadd.s32 %s308, %s25
        %s310 = smul.u32 2, %s309
        %p312 = scmp.eq.s32.totalorder %s25, 0
        // Predicated region
        $region37: #{tpu_custom_call.1} parent=35 // pred_check
          %p313 = pneg %p312
        $region38: #{tpu_custom_call.1} parent=35 // pred_check_branch
          %315 = sbr.rel (%p313) target = $region40
        $region39: #{tpu_custom_call.1} parent=35 // pred_region
          %vm316 = vcmask 130048
          %317 = vst.msk [vmem:[%s280] sm:$0xff] %vm316, 0.0
        $region40: #{tpu_custom_call.1} parent=35 // pred_fallthru
          _
        %v318 = vld [vmem:[%s287] sm:$0xff]
        %v319 = vld [vmem:[%s287 + $0x8] sm:$0xff]
        %v320 = vpack.c.bf16 %v319, %v318
        %v321 = vld [vmem:[%s1] sm:$0xf]
        %v322 = vld [vmem:[%s1 + $0x4] sm:$0xf]
        %v323 = vld [vmem:[%s2] sm:$0x1]
        %v325 = vlaneseq
        %v326 = vshrl.u32 %v325, 7
        %v327 = vsub.s32 0, %v326
        %v328 = vrot.slane %v323, %v327
        %v332 = vunpack.c.l.b16 %v321
        %v333 = vunpack.c.l.b16 %v322
        %v334 = vpack.c.b16 %v333, %v332
        %vm336 = vcmask 130048
        %v338 = vsel %vm336, %v320, 0
        %340 = vmatprep.subr.bf16.mxu0 0
        %341 = vmatpush1.bf16.msra.mxu0 %v334
        %342 = vmatprep.subr.bf16.mxu0 0
        %343 = vmatpush1.bf16.msra.mxu0 0
        %344 = vmatprep.subr.bf16.mxu0 0
        %345 = vmatpush1.bf16.msra.mxu0 0
        %346 = vmatprep.subr.bf16.mxu0 0
        %347 = vmatpush1.bf16.msra.mxu0 0
        %348 = vmatprep.subr.bf16.mxu0 0
        %349 = vmatpush1.bf16.msra.mxu0 0
        %350 = vmatprep.subr.bf16.mxu0 0
        %351 = vmatpush1.bf16.msra.mxu0 0
        %352 = vmatprep.subr.bf16.mxu0 0
        %353 = vmatpush1.bf16.msra.mxu0 0
        %354 = vmatprep.subr.bf16.mxu0 0
        %355 = vmatpush1.bf16.msra.mxu0 0
        %356 = vmatprep.subr.bf16.mxu0 0
        %357 = vmatpush1.bf16.msra.mxu0 0
        %358 = vmatprep.subr.bf16.mxu0 0
        %359 = vmatpush1.bf16.msra.mxu0 0
        %360 = vmatprep.subr.bf16.mxu0 0
        %361 = vmatpush1.bf16.msra.mxu0 0
        %362 = vmatprep.subr.bf16.mxu0 0
        %363 = vmatpush1.bf16.msra.mxu0 0
        %364 = vmatprep.subr.bf16.mxu0 0
        %365 = vmatpush1.bf16.msra.mxu0 0
        %366 = vmatprep.subr.bf16.mxu0 0
        %367 = vmatpush1.bf16.msra.mxu0 0
        %368 = vmatprep.subr.bf16.mxu0 0
        %369 = vmatpush1.bf16.msra.mxu0 0
        %370 = vmatprep.subr.bf16.mxu0 0
        %371 = vmatpush1.bf16.msra.mxu0 0
        %372 = vmatprep.mubr.bf16.mxu0 0
        %373 = vmatmul.mubr.bf16.gmra.mrb[0].mxu0 %v338
        %v374 = vpop.f32.mrb[0].mxu0
        %v375 = vadd.f32 %v328, %v374
        %v376 = vpop.f32.mrb[0].mxu0
        %v377 = vpop.f32.mrb[0].mxu0
        %v378 = vadd.f32 %v328, %v377
        %v379 = vpop.f32.mrb[0].mxu0
        %380 = vdwg.mxu0
        %v381 = vld [vmem:[%s297] sm:$0xff]
        %v382 = vld [vmem:[%s297 + $0x8] sm:$0xff]
        %v383 = vadd.f32 %v375, %v381
        %v384 = vadd.f32 %v378, %v382
        %v385 = vlaneseq
        %v386 = vand.u32 %v385, 127
        %vm387 = vcmask 64512
        %v388 = vsel %vm387, %v383, -inf
        %389 = vmax.xlane.f32.xlu0 %v388
        %v390 = vpop.xlane.xlu0 %389
        %v391 = vsel %vm387, %v384, -inf
        %392 = vmax.xlane.f32.xlu0 %v391
        %v393 = vpop.xlane.xlu0 %392
        %vm394 = vcmp.eq.f32.partialorder %v383, %v390
        %vm395 = vcmp.eq.f32.partialorder %v384, %v393
        %v396 = vsel %vm394, %v386, 8
        %v397 = vsel %vm395, %v386, 8
        %v398 = vsel %vm387, %v396, 2147483647
        %v399 = vand.u32 %v398, 65535
        %v400 = vshra.s32 %v398, 16
        %v401 = vcvt.s32.f32 %v399
        %v402 = vcvt.s32.f32 %v400
        %403 = vmin.xlane.f32.xlu0 %v402
        %v404 = vpop.xlane.xlu0 %403
        %vm405 = vcmp.eq.f32.partialorder %v402, %v404
        %v406 = vsel %vm405, %v401, inf
        %407 = vmin.xlane.f32.xlu0 %v406
        %v408 = vpop.xlane.xlu0 %407
        %v409 = vcvt.f32.s32 %v408
        %v410 = vcvt.f32.s32 %v404
        %v411 = vshll.u32 %v410, 16
        %v412 = vadd.s32 %v411, %v409
        %v413 = vsel %vm387, %v397, 2147483647
        %v414 = vand.u32 %v413, 65535
        %v415 = vshra.s32 %v413, 16
        %v416 = vcvt.s32.f32 %v414
        %v417 = vcvt.s32.f32 %v415
        %418 = vmin.xlane.f32.xlu0 %v417
        %v419 = vpop.xlane.xlu0 %418
        %vm420 = vcmp.eq.f32.partialorder %v417, %v419
        %v421 = vsel %vm420, %v416, inf
        %422 = vmin.xlane.f32.xlu0 %v421
        %v423 = vpop.xlane.xlu0 %422
        %v424 = vcvt.f32.s32 %v423
        %v425 = vcvt.f32.s32 %v419
        %v426 = vshll.u32 %v425, 16
        %v427 = vadd.s32 %v426, %v424
        %vm428 = vcmp.lt.s32.totalorder %v412, 7
        %v429 = vsel %vm428, %v412, 7
        %vm430 = vcmp.lt.s32.totalorder %v427, 7
        %v431 = vsel %vm430, %v427, 7
        %vm432 = vcmp.eq.s32.totalorder %v386, %v429
        %vm433 = vcmp.eq.s32.totalorder %v386, %v431
        %v434 = vsel %vm432, 1, 0
        %v435 = vsel %vm433, 1, 0
        %v436 = vcvt.s32.f32 %v434
        %v437 = vcvt.s32.f32 %v435
        %438 = vst.msk [vmem:[%s307] sm:$0xff] %vm387, %v436
        %439 = vst.msk [vmem:[%s307 + $0x8] sm:$0xff] %vm387, %v437
        %v440 = vld [vmem:[%s280] sm:$0xff]
        %441 = vxpose.xlu0.b32.start [1/16] %v436, 128
        %442 = vxpose.xlu0.b32.cont [2/16] %v437, 128
        %443 = vxpose.xlu0.b32.cont [3/16] 0.0, 128
        %444 = vxpose.xlu0.b32.cont [4/16] 0.0, 128
        %445 = vxpose.xlu0.b32.cont [5/16] 0.0, 128
        %446 = vxpose.xlu0.b32.cont [6/16] 0.0, 128
        %447 = vxpose.xlu0.b32.cont [7/16] 0.0, 128
        %448 = vxpose.xlu0.b32.cont [8/16] 0.0, 128
        %449 = vxpose.xlu0.b32.cont [9/16] 0.0, 128
        %450 = vxpose.xlu0.b32.cont [10/16] 0.0, 128
        %451 = vxpose.xlu0.b32.cont [11/16] 0.0, 128
        %452 = vxpose.xlu0.b32.cont [12/16] 0.0, 128
        %453 = vxpose.xlu0.b32.cont [13/16] 0.0, 128
        %454 = vxpose.xlu0.b32.cont [14/16] 0.0, 128
        %455 = vxpose.xlu0.b32.cont [15/16] 0.0, 128
        %456 = vxpose.xlu0.b32.end [16/16] 0.0, 128
        %v457 = vpop.trf.xlu0
        %v458 = vpop.trf.xlu0
        %v459 = vpop.trf.xlu0
        %v460 = vpop.trf.xlu0
        %v461 = vpop.trf.xlu0
        %v462 = vpop.trf.xlu0
        %v463 = vpop.trf.xlu0
        %v464 = vpop.trf.xlu0
        %v465 = vpop.trf.xlu0
        %v466 = vpop.trf.xlu0
        %v467 = vpop.trf.xlu0
        %v468 = vpop.trf.xlu0
        %v469 = vpop.trf.xlu0
        %v470 = vpop.trf.xlu0
        %v471 = vpop.trf.xlu0
        %v472 = vpop.trf.xlu0
        %v474 = vsel %vm336, %v457, 0
        %476 = vmatprep.subr.mxu0 0.0
        %477 = vmatpush1.msra.mxu0 %v318
        %478 = vmatprep.subr.mxu0 0.0
        %479 = vmatpush1.msra.mxu0 %v319
        %480 = vmatprep.subr.mxu0 0.0
        %481 = vmatpush1.msra.mxu0 0.0
        %482 = vmatprep.subr.mxu0 0.0
        %483 = vmatpush1.msra.mxu0 0.0
        %484 = vmatprep.subr.mxu0 0.0
        %485 = vmatpush1.msra.mxu0 0.0
        %486 = vmatprep.subr.mxu0 0.0
        %487 = vmatpush1.msra.mxu0 0.0
        %488 = vmatprep.subr.mxu0 0.0
        %489 = vmatpush1.msra.mxu0 0.0
        %490 = vmatprep.subr.mxu0 0.0
        %491 = vmatpush1.msra.mxu0 0.0
        %492 = vmatprep.subr.mxu0 0.0
        %493 = vmatpush1.msra.mxu0 0.0
        %494 = vmatprep.subr.mxu0 0.0
        %495 = vmatpush1.msra.mxu0 0.0
        %496 = vmatprep.subr.mxu0 0.0
        %497 = vmatpush1.msra.mxu0 0.0
        %498 = vmatprep.subr.mxu0 0.0
        %499 = vmatpush1.msra.mxu0 0.0
        %500 = vmatprep.subr.mxu0 0.0
        %501 = vmatpush1.msra.mxu0 0.0
        %502 = vmatprep.subr.mxu0 0.0
        %503 = vmatpush1.msra.mxu0 0.0
        %504 = vmatprep.subr.mxu0 0.0
        %505 = vmatpush1.msra.mxu0 0.0
        %506 = vmatprep.subr.mxu0 0.0
        %507 = vmatpush1.msra.mxu0 0.0
        %508 = vmatprep.subr.mxu0 0.0
        %509 = vmatpush1.msra.mxu0 0.0
        %510 = vmatprep.subr.mxu0 0.0
        %511 = vmatpush1.msra.mxu0 0.0
        %512 = vmatprep.subr.mxu0 0.0
        %513 = vmatpush1.msra.mxu0 0.0
        %514 = vmatprep.subr.mxu0 0.0
        %515 = vmatpush1.msra.mxu0 0.0
        %516 = vmatprep.subr.mxu0 0.0
        %517 = vmatpush1.msra.mxu0 0.0
        %518 = vmatprep.subr.mxu0 0.0
        %519 = vmatpush1.msra.mxu0 0.0
        %520 = vmatprep.subr.mxu0 0.0
        %521 = vmatpush1.msra.mxu0 0.0
        %522 = vmatprep.subr.mxu0 0.0
        %523 = vmatpush1.msra.mxu0 0.0
        %524 = vmatprep.subr.mxu0 0.0
        %525 = vmatpush1.msra.mxu0 0.0
        %526 = vmatprep.subr.mxu0 0.0
        %527 = vmatpush1.msra.mxu0 0.0
        %528 = vmatprep.subr.mxu0 0.0
        %529 = vmatpush1.msra.mxu0 0.0
        %530 = vmatprep.subr.mxu0 0.0
        %531 = vmatpush1.msra.mxu0 0.0
        %532 = vmatprep.subr.mxu0 0.0
        %533 = vmatpush1.msra.mxu0 0.0
        %534 = vmatprep.subr.mxu0 0.0
        %535 = vmatpush1.msra.mxu0 0.0
        %536 = vmatprep.subr.mxu0 0.0
        %537 = vmatpush1.msra.mxu0 0.0
        %538 = vmatprep.subr.mxu0 0.0
        %539 = vmatpush1.msra.mxu0 0.0
        %540 = vmatprep.mubr.f32.mxu0 0.0
        %541 = vmatmul.mubr.f32.gmra.mrb[0].mxu0 %v474
        %v542 = vpop.f32.mrb[0].mxu0
        %v543 = vadd.f32 0.0, %v542
        %v544 = vpop.f32.mrb[0].mxu0
        %545 = vdwg.mxu0
        %v546 = vadd.f32 %v440, %v543
        %547 = vst.msk [vmem:[%s280] sm:$0xff] %vm336, %v546
        %s548 = smul.u32 %s24, 2
        %s549 = sadd.s32 %s548, %s25
        %s550 = smul.u32 2, %s549
        %p551 = scmp.lt.s32.totalorder %s550, 7
        %s552 = scalar_select %p551, %s550, 7
        %s553 = smul.addr %s552, 8
        %s554 = scalar_lea.vmem %s4, %s553
        %s555 = sand.u32 %s172, 1
        %s556 = scalar_lea.sflag [#allocation3], %s555
        %s557 = sand.u32 %s172, 1
        %s558 = smul.addr %s557, 8
        %s559 = scalar_lea.vmem [#allocation2], %s558
        // Predicated region
        $region41: #{tpu_custom_call.1} parent=35 // pred_check
          %p560 = pneg %p156
        $region42: #{tpu_custom_call.1} parent=35 // pred_check_branch
          %562 = sbr.rel (%p560) target = $region44
        $region43: #{tpu_custom_call.1} parent=35 // pred_region
          %s563 = smul.u32 %s24, 2
          %s564 = sadd.s32 %s563, %s25
          %s565 = smul.u32 2, %s564
        $region44: #{tpu_custom_call.1} parent=35 // pred_fallthru
          _
        // Predicated region
        $region45: #{tpu_custom_call.1} parent=35 // pred_check
          %p566 = pneg %p182
        $region46: #{tpu_custom_call.1} parent=35 // pred_check_branch
          %568 = sbr.rel (%p566) target = $region48
        $region47: #{tpu_custom_call.1} parent=35 // pred_region
          %s570 = ssub.s32 128, 128
          %571 = vsyncadd %s556, %s570
          %s572 = smul.addr %s24, 128
          %s573 = scalar_lea.hbm %s5, %s572
          %s575 = sshll.u32 %s559, 4
          %s576 = int_to_ptr.vmem [resolvable:$true] %s575
          %578 = dma.vmem_to_hbm [thread:$0]  %s576, 128, %s573, %s556
        $region48: #{tpu_custom_call.1} parent=35 // pred_fallthru
          _
      $region36: #{tpu_custom_call.1} parent=5 // pred_fallthru
        _
      %p579 = scmp.le.s32.totalorder 2, %s15
      // Predicated region
      $region49: #{tpu_custom_call.1} parent=5 // pred_check
        %p580 = pneg %p579
      $region50: #{tpu_custom_call.1} parent=5 // pred_check_branch
        %582 = sbr.rel (%p580) target = $region52
      $region51: #{tpu_custom_call.1} parent=5 // pred_region
        %s583 = ssub.s32 %s15, 2
        // Predicated region
        $region53: #{tpu_custom_call.1} parent=51 // pred_check
          %p584 = pneg %p162
        $region54: #{tpu_custom_call.1} parent=51 // pred_check_branch
          %586 = sbr.rel (%p584) target = $region56
        $region55: #{tpu_custom_call.1} parent=51 // pred_region
          %s587 = smul.u32 %s26, 2
          %s588 = sadd.s32 %s587, %s27
          %s589 = smul.u32 2, %s588
          %p590 = scmp.lt.s32.totalorder %s589, 7
          %s591 = scalar_select %p590, %s589, 7
          %s592 = smul.addr %s591, 8
          %s593 = scalar_lea.vmem %s4, %s592
        $region56: #{tpu_custom_call.1} parent=51 // pred_fallthru
          _
        // Predicated region
        $region57: #{tpu_custom_call.1} parent=51 // pred_check
          %p594 = pneg %p188
        $region58: #{tpu_custom_call.1} parent=51 // pred_check_branch
          %596 = sbr.rel (%p594) target = $region60
        $region59: #{tpu_custom_call.1} parent=51 // pred_region
          %s597 = sand.u32 %s173, 1
          %s598 = scalar_lea.sflag [#allocation3], %s597
          %s599 = sand.u32 %s173, 1
          %s600 = smul.addr %s599, 8
          %s601 = scalar_lea.vmem [#allocation2], %s600
          %602 = dma.done %s598, 128
        $region60: #{tpu_custom_call.1} parent=51 // pred_fallthru
          _
      $region52: #{tpu_custom_call.1} parent=5 // pred_fallthru
        _
    $region6: #{tpu_custom_call.1} parent=1 // loop_footer
      %s19 = sadd.s32 1, %s15
    $region7: #{tpu_custom_call.1} parent=1 // loop_footer_branch
      %14 = sbr.rel target = $region3
    $region8: #{tpu_custom_call.1} parent=1 // loop_exit
      _
    %603 = vsyncpa [#allocation3], 1
    %s604 = scalar_lea.sflag [#allocation3], 1
    %605 = vsyncpa %s604, 1

</llo_original>
